<compile_context>
chip_gen: v5e
topology: v5e:2x2
jax: 0.10.0
libtpu: 0.0.40
codegen_flags: <defaults>
</compile_context>

<pallas_src>
import math

import jax
import jax.numpy as jnp
from jax import lax
from jax.experimental import pallas as pl
from jax.experimental.pallas import tpu as pltpu


def _vmem_limit_bytes():
    """Generation-aware VMEM request: ~3/4 of physical (48 MiB v7x, 96 MiB v5e/v6e)."""
    try:
        cap = pltpu.get_tpu_info().vmem_capacity_bytes
    except Exception:  # conservative fallback if the query is unavailable
        cap = 64 * 1024 * 1024
    return int(min(100 * 1024 * 1024, cap * 3 // 4))


def _pick_tile(dim, pref, granule):
    """Largest tile <= pref that divides dim and is a multiple of `granule`.

    Falls back to the full dimension (always a legal block) when no such tile exists.
    TODO(synk): true ragged tiling (pl.cdiv grid + masking) not implemented.
    """
    if dim <= pref:
        return dim
    for cand in range(min(pref, dim), granule - 1, -1):
        if dim % cand == 0 and cand % granule == 0:
            return cand
    return dim


# --------------------------- fused / tiled linear --------------------------- #

def _linear_kernel(x_ref, w_ref, b_ref, o_ref, acc_ref):
    # x_ref: (1, 1, tm, tk)  activation tile (compute dtype, e.g. bf16)
    # w_ref: (1, tn, tk)     weight tile, PyTorch [out, in] layout (no transpose)
    # b_ref: (1, 1, tn)      bias tile, f32
    # o_ref: (1, 1, tm, tn)  output tile (resident across the K axis)
    k = pl.program_id(4)

    @pl.when(k == 0)
    def _():
        acc_ref[...] = jnp.zeros_like(acc_ref)

    # contract the last dims of both operands -> (tm, tn) on the MXU, f32 accumulation
    acc_ref[...] += lax.dot_general(
        x_ref[0, 0], w_ref[0],
        (((1,), (1,)), ((), ())),
        preferred_element_type=jnp.float32)

    @pl.when(k == pl.num_programs(4) - 1)
    def _():
        o_ref[0, 0] = (acc_ref[...] + b_ref[0]).astype(o_ref.dtype)


def fused_linear_pallas(x, w, b, *, out_dtype=None, tm=256, tn=512, tk=512):
    """x: [Gx, B, S, Din] (Gx in {1, G}), w: [G, Dout, Din], b: [G, Dout].

    Computes x[g or 0] @ w[g].T + b[g] for all G stacked linears in one pallas_call.
    Gx == 1 is the shared-activation (self-attention) fast path: the activation is
    streamed once; its index_map ignores the G axis.
    """
    Gx, B, S, Din = x.shape
    G, Dout, _ = w.shape
    out_dtype = x.dtype if out_dtype is None else out_dtype

    tm = _pick_tile(S, tm, 8)
    tn = _pick_tile(Dout, tn, 128)
    tk = _pick_tile(Din, tk, 128)
    grid = (G, B, S // tm, Dout // tn, Din // tk)

    if Gx == 1:
        x_map = lambda g, bb, i, j, k: (0, bb, i, k)
    else:
        x_map = lambda g, bb, i, j, k: (g, bb, i, k)

    # advisory cost (accounts for the re-streaming implied by this grid order)
    cost = pl.CostEstimate(
        flops=2 * G * B * S * Din * Dout,
        transcendentals=0,
        bytes_accessed=int(x.size * x.dtype.itemsize * (Dout // tn)
                           + w.size * w.dtype.itemsize * B * (S // tm)
                           + b.size * 4
                           + G * B * S * Dout * jnp.dtype(out_dtype).itemsize))

    return pl.pallas_call(
        _linear_kernel,
        out_shape=jax.ShapeDtypeStruct((G, B, S, Dout), out_dtype),
        grid=grid,
        in_specs=[
            pl.BlockSpec((1, 1, tm, tk), x_map),
            pl.BlockSpec((1, tn, tk), lambda g, bb, i, j, k: (g, j, k)),
            pl.BlockSpec((1, 1, tn), lambda g, bb, i, j, k: (g, 0, j)),
        ],
        out_specs=pl.BlockSpec((1, 1, tm, tn), lambda g, bb, i, j, k: (g, bb, i, j)),
        scratch_shapes=[pltpu.VMEM((tm, tn), jnp.float32)],
        compiler_params=pltpu.CompilerParams(
            dimension_semantics=("parallel",) * 4 + ("arbitrary",),
            vmem_limit_bytes=_vmem_limit_bytes()),
        cost_estimate=cost,
    )(x, w, b.reshape(G, 1, Dout).astype(jnp.float32))


# ---------------------- flash-style multi-head attention -------------------- #

def _flash_mha_kernel(q_ref, k_ref, v_ref, o_ref, m_ref, l_ref, acc_ref):
    # q_ref: (1, 1, H, tq, d_k)   k_ref/v_ref: (1, 1, H, tkv, d_k)   o_ref: (1, H, tq, d_k)
    # m_ref/l_ref: (H, tq, 1) f32   acc_ref: (H, tq, d_k) f32        (VMEM scratch)
    ki = pl.program_id(2)

    @pl.when(ki == 0)
    def _():
        m_ref[...] = jnp.full_like(m_ref, -jnp.inf)
        l_ref[...] = jnp.zeros_like(l_ref)
        acc_ref[...] = jnp.zeros_like(acc_ref)

    q = q_ref[0, 0]                       # (H, tq, d_k)   compute dtype (bf16/f32)
    k = k_ref[0, 0]                       # (H, tkv, d_k)
    v = v_ref[0, 0]                       # (H, tkv, d_k)

    # all heads batched in one MXU einsum; 1/sqrt(d_k) already folded into W_q.
    s = jnp.einsum('hqd,hkd->hqk', q, k, preferred_element_type=jnp.float32)
    # TODO(synk): mask (masked_fill) and train-mode dropout on the scores not implemented.

    m_prev = m_ref[...]                                        # (H, tq, 1)
    m_new = jnp.maximum(m_prev, jnp.max(s, axis=-1, keepdims=True))
    alpha = jnp.exp(m_prev - m_new)
    p = jnp.exp(s - m_new)                                     # (H, tq, tkv) f32
    l_ref[...] = alpha * l_ref[...] + jnp.sum(p, axis=-1, keepdims=True)
    acc_ref[...] = alpha * acc_ref[...] + jnp.einsum(
        'hqk,hkd->hqd', p.astype(v.dtype), v, preferred_element_type=jnp.float32)
    m_ref[...] = m_new

    @pl.when(ki == pl.num_programs(2) - 1)
    def _():
        inv_l = pl.reciprocal(l_ref[...], approx=False)        # exact: output precision
        o_ref[0] = (acc_ref[...] * inv_l).astype(o_ref.dtype)


def attention_pallas(qkv_h, *, tq=256, tkv=256):
    """qkv_h: [3, B, H, S, d_k] head-major stacked Q/K/V -> context [B, H, S, d_k]."""
    _, B, H, S, d_k = qkv_h.shape
    tq = _pick_tile(S, tq, 8)
    tkv = _pick_tile(S, tkv, 8)
    grid = (S // tq, B, S // tkv)          # largest parallel axes lead (v7x 2-TC split)

    itemsize = qkv_h.dtype.itemsize
    cost = pl.CostEstimate(
        flops=4 * B * H * S * S * d_k,
        transcendentals=B * H * S * S,
        bytes_accessed=int((2 * B * H * S * d_k) * itemsize * (S // tq)   # K/V re-streamed
                           + (2 * B * H * S * d_k) * itemsize))           # Q in, ctx out

    return pl.pallas_call(
        _flash_mha_kernel,
        out_shape=jax.ShapeDtypeStruct((B, H, S, d_k), qkv_h.dtype),
        grid=grid,
        in_specs=[
            pl.BlockSpec((1, 1, H, tq, d_k), lambda qi, bb, ki: (0, bb, 0, qi, 0)),   # Q
            pl.BlockSpec((1, 1, H, tkv, d_k), lambda qi, bb, ki: (1, bb, 0, ki, 0)),  # K
            pl.BlockSpec((1, 1, H, tkv, d_k), lambda qi, bb, ki: (2, bb, 0, ki, 0)),  # V
        ],
        out_specs=pl.BlockSpec((1, H, tq, d_k), lambda qi, bb, ki: (bb, 0, qi, 0)),
        scratch_shapes=[
            pltpu.VMEM((H, tq, 1), jnp.float32),     # running max m
            pltpu.VMEM((H, tq, 1), jnp.float32),     # running sum l
            pltpu.VMEM((H, tq, d_k), jnp.float32),   # running context accumulator
        ],
        compiler_params=pltpu.CompilerParams(
            dimension_semantics=("parallel", "parallel", "arbitrary"),
            vmem_limit_bytes=_vmem_limit_bytes()),
        cost_estimate=cost,
    )(qkv_h, qkv_h, qkv_h)


# ------------------------------- MHA forward -------------------------------- #

def init_mha_params(key, d_model):
    """Deterministic init mimicking nn.Linear default (U[-1/sqrt(in), 1/sqrt(in)])."""
    bound = 1.0 / math.sqrt(d_model)
    names = ["q_linear", "k_linear", "v_linear", "out"]
    params = {}
    keys = jax.random.split(key, 2 * len(names))
    for i, name in enumerate(names):
        wk, bk = keys[2 * i], keys[2 * i + 1]
        params[name] = {
            "w": jax.random.uniform(wk, (d_model, d_model), jnp.float32, -bound, bound),
            "b": jax.random.uniform(bk, (d_model,), jnp.float32, -bound, bound),
        }
    return params


def multi_head_attention(params, q, k, v, heads, compute_dtype=jnp.bfloat16):
    """Forward of the PyTorch MultiHeadAttentioin (mask=None, eval-mode dropout)."""
    B, S, D = q.shape
    assert D % heads == 0
    d_k = D // heads
    out_dtype = q.dtype
    scale = 1.0 / math.sqrt(d_k)

    # ---- fused Q/K/V projection (one pallas_call); 1/sqrt(d_k) folded into W_q / b_q.
    w_qkv = jnp.stack([params["q_linear"]["w"] * scale,
                       params["k_linear"]["w"],
                       params["v_linear"]["w"]]).astype(compute_dtype)        # (3, D, D)
    b_qkv = jnp.stack([params["q_linear"]["b"] * scale,
                       params["k_linear"]["b"],
                       params["v_linear"]["b"]]).astype(jnp.float32)          # (3, D)

    if (q is k) and (k is v):
        x = q.astype(compute_dtype)[None]                  # (1, B, S, D) self-attn fast path
    else:
        x = jnp.stack([q, k, v]).astype(compute_dtype)     # (3, B, S, D)
    qkv = fused_linear_pallas(x, w_qkv, b_qkv, out_dtype=compute_dtype)       # (3, B, S, D)

    # ---- head-major layout: heads become the leading batch of the attention einsums.
    qkv_h = qkv.reshape(3, B, S, heads, d_k).transpose(0, 1, 3, 2, 4)         # (3, B, H, S, d_k)

    # ---- flash-style attention (online softmax, no [S, S] materialization).
    ctx_h = attention_pallas(qkv_h)                                           # (B, H, S, d_k)

    # ---- back to lane-dense [B, S, D] and output projection.
    ctx = ctx_h.transpose(0, 2, 1, 3).reshape(B, S, D)
    out = fused_linear_pallas(ctx[None],
                              params["out"]["w"][None].astype(compute_dtype),
                              params["out"]["b"][None],
                              out_dtype=out_dtype)[0]
    return out


# ---------------------------- pure-JAX reference ----------------------------- #

def reference_mha(params, q, k, v, heads):
    B, S, D = q.shape
    d_k = D // heads

    def lin(x, p):
        return x @ p["w"].T + p["b"]

    def split(x):
        return x.reshape(B, S, heads, d_k).transpose(0, 2, 1, 3)

    qh = split(lin(q, params["q_linear"]))
    kh = split(lin(k, params["k_linear"]))
    vh = split(lin(v, params["v_linear"]))
    scores = jnp.einsum("bhqd,bhkd->bhqk", qh, kh) / math.sqrt(d_k)
    p = jax.nn.softmax(scores, axis=-1)
    ctx = jnp.einsum("bhqk,bhkd->bhqd", p, vh)
    concat = ctx.transpose(0, 2, 1, 3).reshape(B, S, D)
    return lin(concat, params["out"])


# ----------------------------------- main ------------------------------------ #

if __name__ == "__main__":
    B, S, D, H = 2, 8, 32, 4

    key = jax.random.PRNGKey(0)
    kp, kq, kk, kv = jax.random.split(key, 4)
    params = init_mha_params(kp, D)

    q = jax.random.normal(kq, (B, S, D), jnp.float32)
    k = jax.random.normal(kk, (B, S, D), jnp.float32)
    v = jax.random.normal(kv, (B, S, D), jnp.float32)

    # 1) f32 compute path — tight check against the pure-JAX reference.
    out_f32 = jax.block_until_ready(
        multi_head_attention(params, q, k, v, H, compute_dtype=jnp.float32))
    ref = reference_mha(params, q, k, v, H)
    assert out_f32.shape == (B, S, D) and out_f32.dtype == q.dtype
    assert jnp.allclose(out_f32, ref, atol=5e-3, rtol=5e-3), (
        "f32 path mismatch, max abs err = %e" % float(jnp.max(jnp.abs(out_f32 - ref))))

    # 2) default bf16 MXU path, exercising the shared-activation self-attention fast
    #    path; tolerance is looser because of bf16 operand rounding on the MXU.
    out_bf16 = jax.block_until_ready(multi_head_attention(params, q, q, q, H))
    ref_self = reference_mha(params, q, q, q, H)
    assert out_bf16.shape == (B, S, D) and out_bf16.dtype == q.dtype
    assert jnp.allclose(out_bf16, ref_self, atol=5e-2, rtol=5e-2), (
        "bf16 path mismatch, max abs err = %e" % float(jnp.max(jnp.abs(out_bf16 - ref_self))))

    print("KERNEL_OK")
</pallas_src>

<mosaic_0001>
module attributes {stable_mosaic.version = 11 : i64} {
  func.func @_linear_kernel(%arg0: i32, %arg1: i32, %arg2: i32, %arg3: i32, %arg4: i32, %arg5: memref<1x1x8x32xf32, #tpu.memory_space<vmem>>, %arg6: memref<1x32x32xf32, #tpu.memory_space<vmem>>, %arg7: memref<1x1x32xf32, #tpu.memory_space<vmem>>, %arg8: memref<1x1x8x32xf32, #tpu.memory_space<vmem>>, %arg9: memref<8x32xf32, #tpu.memory_space<vmem>>) attributes {dimension_semantics = [#tpu.dimension_semantics<parallel>, #tpu.dimension_semantics<parallel>, #tpu.dimension_semantics<parallel>, #tpu.dimension_semantics<parallel>, #tpu.dimension_semantics<arbitrary>], iteration_bounds = array<i64: 3, 2, 1, 1, 1>, scalar_prefetch = 0 : i64, scratch_operands = 1 : i64, tpu.core_type = #tpu.core_type<tc>, window_params = [{transform_indices = @transform_0, window_bounds = array<i64: 1, 1, 8, 32>}, {transform_indices = @transform_1, window_bounds = array<i64: 1, 32, 32>}, {transform_indices = @transform_2, window_bounds = array<i64: 1, 1, 32>}, {transform_indices = @transform_3, window_bounds = array<i64: 1, 1, 8, 32>}]} {
    %c0_i32 = arith.constant 0 : i32
    %0 = arith.cmpi eq, %arg4, %c0_i32 : i32
    %1 = arith.extui %0 : i1 to i32
    %c0_i32_0 = arith.constant 0 : i32
    %2 = arith.cmpi ne, %1, %c0_i32_0 : i32
    scf.if %2 {
      %cst_13 = arith.constant 0.000000e+00 : f32
      %14 = vector.broadcast %cst_13 : f32 to vector<8x32xf32>
      %c0_14 = arith.constant 0 : index
      %c0_15 = arith.constant 0 : index
      %15 = vector.load %arg9[%c0_14, %c0_15] : memref<8x32xf32, #tpu.memory_space<vmem>>, vector<8x32xf32>
      tpu.vector_store %arg9[%c0_14, %c0_15], %14 {strides = array<i32>} : memref<8x32xf32, #tpu.memory_space<vmem>>, vector<8x32xf32>,
    } else {
    }
    %c0 = arith.constant 0 : index
    %c0_1 = arith.constant 0 : index
    %3 = vector.load %arg9[%c0, %c0_1] : memref<8x32xf32, #tpu.memory_space<vmem>>, vector<8x32xf32>
    %c0_2 = arith.constant 0 : index
    %c0_3 = arith.constant 0 : index
    %c0_4 = arith.constant 0 : index
    %c0_5 = arith.constant 0 : index
    %4 = vector.load %arg5[%c0_2, %c0_3, %c0_4, %c0_5] : memref<1x1x8x32xf32, #tpu.memory_space<vmem>>, vector<1x1x8x32xf32>
    %5 = vector.shape_cast %4 : vector<1x1x8x32xf32> to vector<8x32xf32>
    %c0_6 = arith.constant 0 : index
    %c0_7 = arith.constant 0 : index
    %c0_8 = arith.constant 0 : index
    %6 = vector.load %arg6[%c0_6, %c0_7, %c0_8] : memref<1x32x32xf32, #tpu.memory_space<vmem>>, vector<1x32x32xf32>
    %7 = vector.shape_cast %6 : vector<1x32x32xf32> to vector<32x32xf32>
    %cst = arith.constant dense<0.000000e+00> : vector<8x32xf32>
    %8 = tpu.matmul %5, %7, %cst {dimension_numbers = #tpu.dot_dimension_numbers<[1], [1], [0], [0], [0, 0, 1, 0], [], []>} : vector<8x32xf32>, vector<32x32xf32>, vector<8x32xf32> -> vector<8x32xf32>
    %9 = arith.addf %3, %8 : vector<8x32xf32>
    %c0_9 = arith.constant 0 : index
    %c0_10 = arith.constant 0 : index
    %10 = vector.load %arg9[%c0_9, %c0_10] : memref<8x32xf32, #tpu.memory_space<vmem>>, vector<8x32xf32>
    tpu.vector_store %arg9[%c0_9, %c0_10], %9 {strides = array<i32>} : memref<8x32xf32, #tpu.memory_space<vmem>>, vector<8x32xf32>,
    %c0_i32_11 = arith.constant 0 : i32
    %11 = arith.cmpi eq, %arg4, %c0_i32_11 : i32
    %12 = arith.extui %11 : i1 to i32
    %c0_i32_12 = arith.constant 0 : i32
    %13 = arith.cmpi ne, %12, %c0_i32_12 : i32
    scf.if %13 {
      %c0_13 = arith.constant 0 : index
      %c0_14 = arith.constant 0 : index
      %14 = vector.load %arg9[%c0_13, %c0_14] : memref<8x32xf32, #tpu.memory_space<vmem>>, vector<8x32xf32>
      %c0_15 = arith.constant 0 : index
      %c0_16 = arith.constant 0 : index
      %c0_17 = arith.constant 0 : index
      %15 = vector.load %arg7[%c0_15, %c0_16, %c0_17] : memref<1x1x32xf32, #tpu.memory_space<vmem>>, vector<1x1x32xf32>
      %16 = vector.shape_cast %15 : vector<1x1x32xf32> to vector<1x32xf32>
      %17 = vector.broadcast %16 : vector<1x32xf32> to vector<8x32xf32>
      %18 = arith.addf %14, %17 : vector<8x32xf32>
      %c0_18 = arith.constant 0 : index
      %c0_19 = arith.constant 0 : index
      %c0_20 = arith.constant 0 : index
      %c0_21 = arith.constant 0 : index
      %19 = vector.load %arg8[%c0_18, %c0_19, %c0_20, %c0_21] : memref<1x1x8x32xf32, #tpu.memory_space<vmem>>, vector<1x1x8x32xf32>
      %20 = vector.shape_cast %19 : vector<1x1x8x32xf32> to vector<8x32xf32>
      %21 = vector.shape_cast %18 : vector<8x32xf32> to vector<1x1x8x32xf32>
      tpu.vector_store %arg8[%c0_18, %c0_19, %c0_20, %c0_21], %21 {strides = array<i32>} : memref<1x1x8x32xf32, #tpu.memory_space<vmem>>, vector<1x1x8x32xf32>,
    } else {
    }
    return
  }
  func.func @transform_0(%arg0: i32, %arg1: i32, %arg2: i32, %arg3: i32, %arg4: i32) -> (i32, i32, i32, i32) {
    %c0_i32 = arith.constant 0 : i32
    return %arg0, %arg1, %arg2, %arg4 : i32, i32, i32, i32
  }
  func.func @transform_1(%arg0: i32, %arg1: i32, %arg2: i32, %arg3: i32, %arg4: i32) -> (i32, i32, i32) {
    %c0_i32 = arith.constant 0 : i32
    return %arg0, %arg3, %arg4 : i32, i32, i32
  }
  func.func @transform_2(%arg0: i32, %arg1: i32, %arg2: i32, %arg3: i32, %arg4: i32) -> (i32, i32, i32) {
    %c0_i32 = arith.constant 0 : i32
    %c0_i32_0 = arith.constant 0 : i32
    return %arg0, %c0_i32, %arg3 : i32, i32, i32
  }
  func.func @transform_3(%arg0: i32, %arg1: i32, %arg2: i32, %arg3: i32, %arg4: i32) -> (i32, i32, i32, i32) {
    %c0_i32 = arith.constant 0 : i32
    return %arg0, %arg1, %arg2, %arg3 : i32, i32, i32, i32
  }
}

</mosaic_0001>

<llo_original>
// kernel: tpu_custom_call.1
$region0: #{tpu_custom_call.1}
  #allocation0 [shape = 'u32[]', space=smem, size = 0x4, offset = 0x4, fixed_abs, tag = 'smem constant byte address 0x4 - core index']
  #allocation1 [shape = 'u32[72,128]{1,0:T(1,128)}', space=vmem, size = 0x9000, scoped, tag = 'internal scratch']
  #allocation2 [shape = 'f32[8,32]{1,0:T(8,128)}', space=vmem, size = 0x1000, scoped, tag = 'scratch operand']
  %s0 = inlined_call_operand.hbm [shape: f32[3,2,8,32], index: 0, kind: input, shape index: {}]
  %s1 = inlined_call_operand.hbm [shape: f32[3,32,32], index: 1, kind: input, shape index: {}]
  %s2 = inlined_call_operand.hbm [shape: f32[3,1,32], index: 2, kind: input, shape index: {}]
  %s3 = inlined_call_operand.hbm [shape: f32[3,2,8,32], index: 3, kind: output, shape index: {}]
  %s4 = sld [smem:[#allocation0]]
  $region65: #{tpu_custom_call.1} parent=0
    _
  %s6 = ssub.s32 1, %s4
  %s7 = scalar_select 0, %s6, %s4
  $region1: #{tpu_custom_call.1} parent=0
    #allocation3 [shape = 'u8[8192]{0}', space=vmem, size = 0x2000, scoped, tag = 'input window, operand 0']
    #allocation4 [shape = 's32[2]{0}', space=sflag, size = 0x8, scoped, tag = 'scoped memory for tpu_custom_call.1']
    #allocation5 [shape = 's32[2]{0}', space=sflag, size = 0x8, scoped, tag = 'scoped memory for tpu_custom_call.1']
    #allocation6 [shape = 'u8[32768]{0}', space=vmem, size = 0x8000, scoped, tag = 'input window, operand 1']
    #allocation7 [shape = 's32[2]{0}', space=sflag, size = 0x8, scoped, tag = 'scoped memory for tpu_custom_call.1']
    #allocation8 [shape = 'u8[1024]{0}', space=vmem, size = 0x400, scoped, tag = 'input window, operand 2']
    #allocation9 [shape = 'u8[8192]{0}', space=vmem, size = 0x2000, scoped, tag = 'output window, operand 0']
    %8 = vsyncpa [#allocation4], 0
    %s9 = scalar_lea.sflag [#allocation4], 1
    %10 = vsyncpa %s9, 0
    %11 = vsyncpa [#allocation7], 0
    %s12 = scalar_lea.sflag [#allocation7], 1
    %13 = vsyncpa %s12, 0
    %14 = vsyncpa [#allocation5], 0
    %s15 = scalar_lea.sflag [#allocation5], 1
    %16 = vsyncpa %s15, 0
    loop: start=0, step=1, limit=8
    $region2: #{tpu_custom_call.1} parent=1 // loop_pre_header
      _
    $region3: #{tpu_custom_call.1} parent=1 // loop_header
      %s18 = sphi 0, %s22
      %p19 = scmp.ge.s32.totalorder %s18, 8
      %s25 = sphi 0, %s58
      %s26 = sphi 0, %s54
      %s27 = sphi 0, %s50
      %s28 = sphi 0, %s46
      %s29 = sphi 0, %s42
      %s30 = sphi 0, %s25
      %s31 = sphi 0, %s26
      %s32 = sphi 0, %s27
      %s33 = sphi 0, %s28
      %s34 = sphi 0, %s29
      %s35 = sphi 0, %s30
      %s36 = sphi 0, %s31
      %s37 = sphi 0, %s32
      %s38 = sphi 0, %s33
      %s39 = sphi 0, %s34
      %s67 = sphi 0, %s69
      %s70 = sphi 0, %s67
      %s71 = sphi 0, %s70
      %s87 = sphi 0, %s71
      %s97 = sphi 0, %s99
      %s100 = sphi 0, %s97
      %s101 = sphi 0, %s100
      %s117 = sphi 0, %s101
      %s125 = sphi 0, %s127
      %s128 = sphi 0, %s125
      %s129 = sphi 0, %s128
      %s145 = sphi 0, %s129
      %s157 = sphi 0, %s159
      %s160 = sphi 0, %s157
      %s161 = sphi 0, %s160
      %s177 = sphi 0, %s161
    $region4: #{tpu_custom_call.1} parent=1 // loop_header_branch
      %21 = sbr.rel (%p19) target = $region8
    $region5: #{tpu_custom_call.1} parent=1 // loop_body
      %s23 = ssub.s32 %s18, 1
      %s24 = ssub.s32 %s18, 2
      %s40 = sadd.s32 1, %s29
      %p41 = scmp.ge.s32.totalorder %s40, 1
      %s42 = scalar_select %p41, 0, %s40
      %s43 = sadd.s32 1, %s28
      %s44 = scalar_select %p41, %s43, %s28
      %p45 = scmp.ge.s32.totalorder %s44, 1
      %s46 = scalar_select %p45, 0, %s44
      %s47 = sadd.s32 1, %s27
      %s48 = scalar_select %p45, %s47, %s27
      %p49 = scmp.ge.s32.totalorder %s48, 1
      %s50 = scalar_select %p49, 0, %s48
      %s51 = sadd.s32 1, %s26
      %s52 = scalar_select %p49, %s51, %s26
      %p53 = scmp.ge.s32.totalorder %s52, 2
      %s54 = scalar_select %p53, 0, %s52
      %s55 = sadd.s32 1, %s25
      %s56 = scalar_select %p53, %s55, %s25
      %p57 = scmp.ge.s32.totalorder %s56, 3
      %s58 = scalar_select %p57, 0, %s56
      %s59 = ssub.s32 %s25, %s58
      %s60 = ssub.s32 %s26, %s54
      %s61 = sor.u32 %s59, %s60
      %s62 = ssub.s32 %s27, %s50
      %s63 = sor.u32 %s61, %s62
      %s64 = ssub.s32 %s29, %s42
      %s65 = sor.u32 %s63, %s64
      %p66 = scmp.eq.s32.totalorder %s65, 0
      %s68 = sadd.s32 %s67, 1
      %s69 = scalar_select %p66, %s67, %s68
      %p72 = pneg %p66
      %p73 = scmp.eq.s32.totalorder %s18, 5
      %p74 = por %p72, %p73
      %p75 = scmp.ne.s32.totalorder %s67, %s70
      %p76 = scmp.eq.s32.totalorder %s18, 0
      %p77 = por %p75, %p76
      %p78 = scmp.ne.s32.totalorder %s67, %s70
      %p79 = scmp.eq.s32.totalorder %s23, 5
      %p80 = por %p78, %p79
      %p81 = scmp.ne.s32.totalorder %s70, %s71
      %p82 = scmp.eq.s32.totalorder %s23, 0
      %p83 = por %p81, %p82
      %p84 = scmp.ne.s32.totalorder %s70, %s71
      %p85 = scmp.eq.s32.totalorder %s24, 5
      %p86 = por %p84, %p85
      %p88 = scmp.ne.s32.totalorder %s71, %s87
      %p89 = scmp.eq.s32.totalorder %s24, 0
      %p90 = por %p88, %p89
      %s91 = ssub.s32 %s25, %s58
      %s92 = ssub.s32 %s28, %s46
      %s93 = sor.u32 %s91, %s92
      %s94 = ssub.s32 %s29, %s42
      %s95 = sor.u32 %s93, %s94
      %p96 = scmp.eq.s32.totalorder %s95, 0
      %s98 = sadd.s32 %s97, 1
      %s99 = scalar_select %p96, %s97, %s98
      %p102 = pneg %p96
      %p103 = scmp.eq.s32.totalorder %s18, 5
      %p104 = por %p102, %p103
      %p105 = scmp.ne.s32.totalorder %s97, %s100
      %p106 = scmp.eq.s32.totalorder %s18, 0
      %p107 = por %p105, %p106
      %p108 = scmp.ne.s32.totalorder %s97, %s100
      %p109 = scmp.eq.s32.totalorder %s23, 5
      %p110 = por %p108, %p109
      %p111 = scmp.ne.s32.totalorder %s100, %s101
      %p112 = scmp.eq.s32.totalorder %s23, 0
      %p113 = por %p111, %p112
      %p114 = scmp.ne.s32.totalorder %s100, %s101
      %p115 = scmp.eq.s32.totalorder %s24, 5
      %p116 = por %p114, %p115
      %p118 = scmp.ne.s32.totalorder %s101, %s117
      %p119 = scmp.eq.s32.totalorder %s24, 0
      %p120 = por %p118, %p119
      %s121 = ssub.s32 %s25, %s58
      %s122 = ssub.s32 %s28, %s46
      %s123 = sor.u32 %s121, %s122
      %p124 = scmp.eq.s32.totalorder %s123, 0
      %s126 = sadd.s32 %s125, 1
      %s127 = scalar_select %p124, %s125, %s126
      %p130 = pneg %p124
      %p131 = scmp.eq.s32.totalorder %s18, 5
      %p132 = por %p130, %p131
      %p133 = scmp.ne.s32.totalorder %s125, %s128
      %p134 = scmp.eq.s32.totalorder %s18, 0
      %p135 = por %p133, %p134
      %p136 = scmp.ne.s32.totalorder %s125, %s128
      %p137 = scmp.eq.s32.totalorder %s23, 5
      %p138 = por %p136, %p137
      %p139 = scmp.ne.s32.totalorder %s128, %s129
      %p140 = scmp.eq.s32.totalorder %s23, 0
      %p141 = por %p139, %p140
      %p142 = scmp.ne.s32.totalorder %s128, %s129
      %p143 = scmp.eq.s32.totalorder %s24, 5
      %p144 = por %p142, %p143
      %p146 = scmp.ne.s32.totalorder %s129, %s145
      %p147 = scmp.eq.s32.totalorder %s24, 0
      %p148 = por %p146, %p147
      %s149 = ssub.s32 %s25, %s58
      %s150 = ssub.s32 %s26, %s54
      %s151 = sor.u32 %s149, %s150
      %s152 = ssub.s32 %s27, %s50
      %s153 = sor.u32 %s151, %s152
      %s154 = ssub.s32 %s28, %s46
      %s155 = sor.u32 %s153, %s154
      %p156 = scmp.eq.s32.totalorder %s155, 0
      %s158 = sadd.s32 %s157, 1
      %s159 = scalar_select %p156, %s157, %s158
      %p162 = pneg %p156
      %p163 = scmp.eq.s32.totalorder %s18, 5
      %p164 = por %p162, %p163
      %p165 = scmp.ne.s32.totalorder %s157, %s160
      %p166 = scmp.eq.s32.totalorder %s18, 0
      %p167 = por %p165, %p166
      %p168 = scmp.ne.s32.totalorder %s157, %s160
      %p169 = scmp.eq.s32.totalorder %s23, 5
      %p170 = por %p168, %p169
      %p171 = scmp.ne.s32.totalorder %s160, %s161
      %p172 = scmp.eq.s32.totalorder %s23, 0
      %p173 = por %p171, %p172
      %p174 = scmp.ne.s32.totalorder %s160, %s161
      %p175 = scmp.eq.s32.totalorder %s24, 5
      %p176 = por %p174, %p175
      %p178 = scmp.ne.s32.totalorder %s161, %s177
      %p179 = scmp.eq.s32.totalorder %s24, 0
      %p180 = por %p178, %p179
      %p181 = scmp.le.s32.totalorder 1, %s18
      %p182 = scmp.lt.s32.totalorder %s18, 7
      %p183 = pnand %p181, %p182
      %p184 = pneg %p183
      // Predicated region
      $region9: #{tpu_custom_call.1} parent=5 // pred_check
        _
      $region10: #{tpu_custom_call.1} parent=5 // pred_check_branch
        %186 = sbr.rel (%p183) target = $region12
      $region11: #{tpu_custom_call.1} parent=5 // pred_region
        %s187 = ssub.s32 %s18, 1
      $region12: #{tpu_custom_call.1} parent=5 // pred_fallthru
        _
      %p188 = scmp.lt.s32.totalorder %s18, 6
      // Predicated region
      $region13: #{tpu_custom_call.1} parent=5 // pred_check
        %p189 = pneg %p188
      $region14: #{tpu_custom_call.1} parent=5 // pred_check_branch
        %191 = sbr.rel (%p189) target = $region16
      $region15: #{tpu_custom_call.1} parent=5 // pred_region
        // Predicated region
        $region17: #{tpu_custom_call.1} parent=15 // pred_check
          %p192 = pneg %p77
        $region18: #{tpu_custom_call.1} parent=15 // pred_check_branch
          %194 = sbr.rel (%p192) target = $region20
        $region19: #{tpu_custom_call.1} parent=15 // pred_region
          %s195 = sand.u32 %s67, 1
          %s196 = scalar_lea.sflag [#allocation4], %s195
          %s197 = sand.u32 %s67, 1
          %s198 = smul.addr %s197, 8
          %s199 = scalar_lea.vmem [#allocation3], %s198
          %201 = vsyncadd %s196, 0
          %s202 = sadd.s32 %s29, %s27
          %s203 = sadd.s32 %s202, %s26
          %s204 = smul.addr %s25, 2
          %s205 = sadd.s32 %s203, %s204
          %s206 = smul.addr %s205, 8
          %s207 = scalar_lea.hbm %s0, %s206
          %s209 = sshll.u32 %s207, 4
          %s210 = int_to_ptr.hbm [resolvable:$true] %s209
          %s211 = sshll.u32 %s199, 4
          %s212 = int_to_ptr.vmem [resolvable:$true] %s211
          %214 = dma.hbm_to_vmem [thread:$0]  %s210, 128, %s212, %s196
        $region20: #{tpu_custom_call.1} parent=15 // pred_fallthru
          _
        // Predicated region
        $region21: #{tpu_custom_call.1} parent=15 // pred_check
          %p215 = pneg %p107
        $region22: #{tpu_custom_call.1} parent=15 // pred_check_branch
          %217 = sbr.rel (%p215) target = $region24
        $region23: #{tpu_custom_call.1} parent=15 // pred_region
          %s218 = sand.u32 %s18, 1
          %s219 = scalar_lea.sflag [#allocation7], %s218
          %s220 = sand.u32 %s97, 1
          %s221 = smul.addr %s220, 32
          %s222 = scalar_lea.vmem [#allocation6], %s221
          %s223 = smul.u32 4, %s28
          %225 = vsyncadd %s219, 0
          %s226 = sadd.s32 %s29, %s223
          %s227 = smul.addr %s25, 4
          %s228 = sadd.s32 %s226, %s227
          %s229 = smul.addr %s228, 8
          %s230 = scalar_lea.hbm %s1, %s229
          %s231 = sshll.u32 %s230, 4
          %s232 = int_to_ptr.hbm [resolvable:$true] %s231
          %s233 = sshll.u32 %s222, 4
          %s234 = int_to_ptr.vmem [resolvable:$true] %s233
          %239 = dma.hbm_to_vmem [thread:$0]  %s232, 512, %s234, %s219, 128, 128, 8
        $region24: #{tpu_custom_call.1} parent=15 // pred_fallthru
          _
        // Predicated region
        $region25: #{tpu_custom_call.1} parent=15 // pred_check
          %p240 = pneg %p135
        $region26: #{tpu_custom_call.1} parent=15 // pred_check_branch
          %242 = sbr.rel (%p240) target = $region28
        $region27: #{tpu_custom_call.1} parent=15 // pred_region
          %s243 = sand.u32 %s18, 1
          %s244 = scalar_lea.sflag [#allocation7], %s243
          %s245 = sand.u32 %s125, 1
          %s246 = scalar_lea.vmem [#allocation8], %s245
          %248 = vsyncadd %s244, 0
          %s249 = sadd.s32 %s28, %s25
          %s250 = scalar_lea.hbm %s2, %s249
          %s252 = sshll.u32 %s250, 4
          %s253 = int_to_ptr.hbm [resolvable:$true] %s252
          %s254 = sshll.u32 %s246, 4
          %s255 = int_to_ptr.vmem [resolvable:$true] %s254
          %257 = dma.hbm_to_vmem [thread:$0]  %s253, 16, %s255, %s244
        $region28: #{tpu_custom_call.1} parent=15 // pred_fallthru
          _
      $region16: #{tpu_custom_call.1} parent=5 // pred_fallthru
        _
      %p258 = scmp.le.s32.totalorder 1, %s18
      %p259 = scmp.lt.s32.totalorder %s18, 7
      %p260 = pnand %p258, %p259
      %p261 = pneg %p260
      // Predicated region
      $region29: #{tpu_custom_call.1} parent=5 // pred_check
        _
      $region30: #{tpu_custom_call.1} parent=5 // pred_check_branch
        %263 = sbr.rel (%p260) target = $region32
      $region31: #{tpu_custom_call.1} parent=5 // pred_region
        %s264 = ssub.s32 %s18, 1
        %s265 = sand.u32 %s70, 1
        %s266 = scalar_lea.sflag [#allocation4], %s265
        %s267 = sand.u32 %s70, 1
        %s268 = smul.addr %s267, 8
        %s269 = scalar_lea.vmem [#allocation3], %s268
        // Predicated region
        $region33: #{tpu_custom_call.1} parent=31 // pred_check
          %p270 = pneg %p83
        $region34: #{tpu_custom_call.1} parent=31 // pred_check_branch
          %272 = sbr.rel (%p270) target = $region36
        $region35: #{tpu_custom_call.1} parent=31 // pred_region
          %274 = dma.done %s266, 128
        $region36: #{tpu_custom_call.1} parent=31 // pred_fallthru
          _
        %s275 = sand.u32 %s23, 1
        %s276 = scalar_lea.sflag [#allocation7], %s275
        %s277 = sand.u32 %s100, 1
        %s278 = smul.addr %s277, 32
        %s279 = scalar_lea.vmem [#allocation6], %s278
        // Predicated region
        $region37: #{tpu_custom_call.1} parent=31 // pred_check
          %p280 = pneg %p113
        $region38: #{tpu_custom_call.1} parent=31 // pred_check_branch
          %282 = sbr.rel (%p280) target = $region40
        $region39: #{tpu_custom_call.1} parent=31 // pred_region
          %284 = dma.done %s276, 512
        $region40: #{tpu_custom_call.1} parent=31 // pred_fallthru
          _
        %s285 = sand.u32 %s23, 1
        %s286 = scalar_lea.sflag [#allocation7], %s285
        %s287 = sand.u32 %s128, 1
        %s288 = scalar_lea.vmem [#allocation8], %s287
        // Predicated region
        $region41: #{tpu_custom_call.1} parent=31 // pred_check
          %p289 = pneg %p141
        $region42: #{tpu_custom_call.1} parent=31 // pred_check_branch
          %291 = sbr.rel (%p289) target = $region44
        $region43: #{tpu_custom_call.1} parent=31 // pred_region
          %293 = dma.done %s286, 16
        $region44: #{tpu_custom_call.1} parent=31 // pred_fallthru
          _
        %s294 = sand.u32 %s70, 1
        %s295 = scalar_lea.sflag [#allocation4], %s294
        %s296 = sand.u32 %s70, 1
        %s297 = smul.addr %s296, 8
        %s298 = scalar_lea.vmem [#allocation3], %s297
        %p299 = pneg %p83
        %p300 = pneg %p80
        %s301 = sand.u32 %s23, 1
        %s302 = scalar_lea.sflag [#allocation7], %s301
        %s303 = sand.u32 %s100, 1
        %s304 = smul.addr %s303, 32
        %s305 = scalar_lea.vmem [#allocation6], %s304
        %p306 = pneg %p113
        %p307 = pneg %p110
        %s308 = sand.u32 %s23, 1
        %s309 = scalar_lea.sflag [#allocation7], %s308
        %s310 = sand.u32 %s128, 1
        %s311 = scalar_lea.vmem [#allocation8], %s310
        %p312 = pneg %p141
        %p313 = pneg %p138
        %p314 = pneg %p173
        %p315 = pneg %p170
        %s316 = sand.u32 %s160, 1
        %s317 = scalar_lea.sflag [#allocation5], %s316
        %s318 = sand.u32 %s160, 1
        %s319 = smul.addr %s318, 8
        %s320 = scalar_lea.vmem [#allocation9], %s319
        %s321 = smul.u32 4, %s33
        %p322 = scmp.eq.s32.totalorder %s34, 0
        // Predicated region
        $region45: #{tpu_custom_call.1} parent=31 // pred_check
          %p323 = pneg %p322
        $region46: #{tpu_custom_call.1} parent=31 // pred_check_branch
          %325 = sbr.rel (%p323) target = $region48
        $region47: #{tpu_custom_call.1} parent=31 // pred_region
          %vm326 = vcmask 261120
          %327 = vst.msk [vmem:[#allocation2] sm:$0xff] %vm326, 0.0
        $region48: #{tpu_custom_call.1} parent=31 // pred_fallthru
          _
        %v328 = vld [vmem:[#allocation2] sm:$0xff]
        %v329 = vld [vmem:[%s269] sm:$0xff]
        %v330 = vld [vmem:[%s279] sm:$0xff]
        %v331 = vld [vmem:[%s279 + $0x8] sm:$0xff]
        %v332 = vld [vmem:[%s279 + $0x10] sm:$0xff]
        %v333 = vld [vmem:[%s279 + $0x18] sm:$0xff]
        %vm334 = vcmask 261120
        %v336 = vsel %vm334, %v329, 0
        %v339 = vsel %vm334, %v330, 0
        %v342 = vsel %vm334, %v331, 0
        %v345 = vsel %vm334, %v332, 0
        %v348 = vsel %vm334, %v333, 0
        %350 = vmatpush.xpose.msra.mxu0 0.0
        %351 = vmatpush.xpose.msra.mxu0 0.0
        %352 = vmatpush.xpose.msra.mxu0 0.0
        %353 = vmatpush.xpose.msra.mxu0 0.0
        %354 = vmatpush.xpose.msra.mxu0 0.0
        %355 = vmatpush.xpose.msra.mxu0 0.0
        %356 = vmatpush.xpose.msra.mxu0 0.0
        %357 = vmatpush.xpose.msra.mxu0 0.0
        %358 = vmatpush.xpose.msra.mxu0 0.0
        %359 = vmatpush.xpose.msra.mxu0 0.0
        %360 = vmatpush.xpose.msra.mxu0 0.0
        %361 = vmatpush.xpose.msra.mxu0 0.0
        %362 = vmatpush.xpose.msra.mxu0 %v348
        %363 = vmatpush.xpose.msra.mxu0 %v345
        %364 = vmatpush.xpose.msra.mxu0 %v342
        %365 = vmatpush.xpose.msra.mxu0 %v339
        %366 = vmatmul.f32.gmra.mxu0 %v336
        %v367 = vpop.f32.mrf.mxu0
        %v368 = vadd.f32 0.0, %v367
        %369 = vdwg.mxu0
        %v370 = vadd.f32 %v328, %v368
        %371 = vst.msk [vmem:[#allocation2] sm:$0xff] %vm334, %v370
        // Predicated region
        $region49: #{tpu_custom_call.1} parent=31 // pred_check
          %p372 = pneg %p322
        $region50: #{tpu_custom_call.1} parent=31 // pred_check_branch
          %374 = sbr.rel (%p372) target = $region52
        $region51: #{tpu_custom_call.1} parent=31 // pred_region
          %v375 = vld [vmem:[#allocation2] sm:$0xff]
          %v376 = vld [vmem:[%s288] sm:$0x1]
          %v378 = vperm.slane %v376, 0
          %v380 = vadd.f32 %v375, %v378
          %381 = vst.msk [vmem:[%s320] sm:$0xff] %vm334, %v380
        $region52: #{tpu_custom_call.1} parent=31 // pred_fallthru
          _
        %s382 = sand.u32 %s160, 1
        %s383 = scalar_lea.sflag [#allocation5], %s382
        %s384 = sand.u32 %s160, 1
        %s385 = smul.addr %s384, 8
        %s386 = scalar_lea.vmem [#allocation9], %s385
        // Predicated region
        $region53: #{tpu_custom_call.1} parent=31 // pred_check
          %p387 = pneg %p170
        $region54: #{tpu_custom_call.1} parent=31 // pred_check_branch
          %389 = sbr.rel (%p387) target = $region56
        $region55: #{tpu_custom_call.1} parent=31 // pred_region
          %391 = vsyncadd %s383, 0
          %s392 = sadd.s32 %s33, %s32
          %s393 = sadd.s32 %s392, %s31
          %s394 = smul.addr %s30, 2
          %s395 = sadd.s32 %s393, %s394
          %s396 = smul.addr %s395, 8
          %s397 = scalar_lea.hbm %s3, %s396
          %s399 = sshll.u32 %s386, 4
          %s400 = int_to_ptr.vmem [resolvable:$true] %s399
          %s401 = sshll.u32 %s397, 4
          %s402 = int_to_ptr.hbm [resolvable:$true] %s401
          %404 = dma.vmem_to_hbm [thread:$0]  %s400, 128, %s402, %s383
        $region56: #{tpu_custom_call.1} parent=31 // pred_fallthru
          _
      $region32: #{tpu_custom_call.1} parent=5 // pred_fallthru
        _
      %p405 = scmp.le.s32.totalorder 2, %s18
      // Predicated region
      $region57: #{tpu_custom_call.1} parent=5 // pred_check
        %p406 = pneg %p405
      $region58: #{tpu_custom_call.1} parent=5 // pred_check_branch
        %408 = sbr.rel (%p406) target = $region60
      $region59: #{tpu_custom_call.1} parent=5 // pred_region
        %s409 = ssub.s32 %s18, 2
        // Predicated region
        $region61: #{tpu_custom_call.1} parent=59 // pred_check
          %p410 = pneg %p176
        $region62: #{tpu_custom_call.1} parent=59 // pred_check_branch
          %412 = sbr.rel (%p410) target = $region64
        $region63: #{tpu_custom_call.1} parent=59 // pred_region
          %s413 = sand.u32 %s161, 1
          %s414 = scalar_lea.sflag [#allocation5], %s413
          %s415 = sand.u32 %s161, 1
          %s416 = smul.addr %s415, 8
          %s417 = scalar_lea.vmem [#allocation9], %s416
          %419 = dma.done %s414, 128
        $region64: #{tpu_custom_call.1} parent=59 // pred_fallthru
          _
      $region60: #{tpu_custom_call.1} parent=5 // pred_fallthru
        _
    $region6: #{tpu_custom_call.1} parent=1 // loop_footer
      %s22 = sadd.s32 1, %s18
    $region7: #{tpu_custom_call.1} parent=1 // loop_footer_branch
      %17 = sbr.rel target = $region3
    $region8: #{tpu_custom_call.1} parent=1 // loop_exit
      _
    %420 = vsyncpa [#allocation4], 1
    %s421 = scalar_lea.sflag [#allocation4], 1
    %422 = vsyncpa %s421, 1
    %423 = vsyncpa [#allocation7], 1
    %s424 = scalar_lea.sflag [#allocation7], 1
    %425 = vsyncpa %s424, 1
    %426 = vsyncpa [#allocation5], 1
    %s427 = scalar_lea.sflag [#allocation5], 1
    %428 = vsyncpa %s427, 1

</llo_original>
